<compile_context>
chip_gen: v6e
topology: v6e:2x2x1
jax: 0.10.0
libtpu: 0.0.40
codegen_flags: <defaults>
</compile_context>

<pallas_src>
import functools

import jax
import jax.numpy as jnp
from jax.experimental import pallas as pl
from jax.experimental.pallas import tpu as pltpu

ATOMS = 51
V_MAX = 10.0
V_MIN = -10.0
DELTA = (V_MAX - V_MIN) / (ATOMS - 1)


def _projection_matrix(skewness):
    """(ATOMS, ATOMS) matrix P with P[j,k] = w_l[j]*[k==l[j]] + w_u[j]*[k==u[j]].

    anchor @ P is exactly the PyTorch clamp loop + the two index_add_ scatters.
    Depends only on `skewness`, so it is computed once here (pure JAX, ~10 KB)
    instead of being rebuilt inside every grid step of the kernel.
    """
    supports = jnp.linspace(V_MIN, V_MAX, ATOMS, dtype=jnp.float32)
    Tz = jnp.clip(jnp.asarray(skewness, jnp.float32) + supports, V_MIN, V_MAX)
    b = (Tz - V_MIN) / DELTA
    l = jnp.floor(b)
    u = jnp.ceil(b)
    eq = l == u
    l = jnp.where((u > 0.0) & eq, l - 1.0, l)
    u = jnp.where((l < float(ATOMS - 1)) & (l == u), u + 1.0, u)
    w_l = u - b
    w_u = b - l
    k = jnp.arange(ATOMS, dtype=jnp.float32)
    P = (jnp.where(k[None, :] == l[:, None], w_l[:, None], 0.0)
         + jnp.where(k[None, :] == u[:, None], w_u[:, None], 0.0))
    return P


def _kl_loss_kernel(p_ref, anchor_ref, feature_ref, partial_ref, *,
                    total_rows, tile_rows):
    i = pl.program_id(0)
    last = pl.num_programs(0) - 1

    # MXU consumes anchor / P in their stored dtype (bf16 stays bf16 -> single
    # pass instead of 3-6 f32 decomposition passes), accumulating in f32.
    # Rows here are "packed": each holds two logical 51-atom distributions and
    # p_ref is block_diag(P, P), so the product is [row0 @ P, row1 @ P].
    skewed = jnp.dot(anchor_ref[...], p_ref[...],
                     preferred_element_type=jnp.float32)

    feat = feature_ref[...].astype(jnp.float32)
    log_feat = jnp.log(feat + 1e-16)
    # kl_div((feature + 1e-16).log(), skewed) pointwise, preserving xlogy(0,0)=0.
    safe = jnp.where(skewed != 0.0, skewed, 1.0)
    pointwise = skewed * (jnp.log(safe) - log_feat)

    # Steady state: plain sum. Only the last block carries padded tail rows
    # (undefined contents, possibly NaN/Inf), which are discarded via a select.
    @pl.when(i != last)
    def _():
        partial_ref[0] = jnp.sum(pointwise, keepdims=True)

    @pl.when(i == last)
    def _():
        rows_valid = total_rows - i * tile_rows
        row_ids = jax.lax.broadcasted_iota(jnp.int32, pointwise.shape, 0)
        masked = jnp.where(row_ids < rows_valid, pointwise, 0.0)
        partial_ref[0] = jnp.sum(masked, keepdims=True)


def kl_loss(anchor, feature, skewness=0.0, *, block_rows=8192):
    anchor = jnp.asarray(anchor)
    feature = jnp.asarray(feature)
    # bf16 is accepted as-is (halves HBM traffic for large B); everything else
    # is normalized to f32. Logs / accumulation are always done in f32.
    if anchor.dtype not in (jnp.float32, jnp.bfloat16):
        anchor = anchor.astype(jnp.float32)
    if feature.dtype not in (jnp.float32, jnp.bfloat16):
        feature = feature.astype(jnp.float32)

    B, A = anchor.shape
    assert feature.shape == (B, A) and A == ATOMS

    # --- Lane fold: pack two logical rows into one 102-lane row. -------------
    # Odd B gets one zero row appended; a zero anchor row yields zero skewed
    # mass, so its KL contribution is exactly 0 (division uses the true B).
    if B % 2 == 1:
        anchor = jnp.concatenate([anchor, jnp.zeros((1, A), anchor.dtype)], 0)
        feature = jnp.concatenate([feature, jnp.zeros((1, A), feature.dtype)], 0)
    Bp = anchor.shape[0] // 2                       # packed row count
    anchor_p = anchor.reshape(Bp, 2 * A)            # contiguous row-major reshape
    feature_p = feature.reshape(Bp, 2 * A)

    # Projection matrix (skewness-only), block-diagonal for the packed layout.
    # Cast to the anchor dtype so a bf16 anchor drives a bf16 MXU pass.
    P = _projection_matrix(skewness)
    Z = jnp.zeros((ATOMS, ATOMS), jnp.float32)
    P2 = jnp.block([[P, Z], [Z, P]]).astype(anchor_p.dtype)

    # --- Tile selection (packed rows). ---------------------------------------
    # Default 8192 logical rows (4096 packed) amortizes the ~0.35 us/step
    # overhead; cap at ~half the packed batch so there are >=2 grid blocks for
    # v7x's two TensorCores whenever the batch is big enough to split.
    bpr = max(8, ((int(block_rows) // 2 + 7) // 8) * 8)   # requested packed rows
    half = ((((Bp + 1) // 2) + 7) // 8) * 8               # half the batch, mult of 8
    tbp = max(8, min(bpr, half))
    nb = (Bp + tbp - 1) // tbp

    # --- VMEM budget at the real padded lane width (102 -> 128 lanes). -------
    # 2 inputs x 2 pipeline buffers + ~6 f32 intermediates (upcast feature,
    # skewed, log_feat, safe, pointwise, masked) + resident P2 + slack.
    lanes = 128
    in_bytes = 2 * tbp * lanes * (anchor_p.dtype.itemsize
                                  + feature_p.dtype.itemsize)
    inter_bytes = 6 * tbp * lanes * 4
    p_bytes = 2 * 104 * lanes * 4
    vmem_limit = int(min(56 << 20,
                         max(8 << 20,
                             in_bytes + inter_bytes + p_bytes + (4 << 20))))

    kernel = functools.partial(_kl_loss_kernel, total_rows=Bp, tile_rows=tbp)

    partials = pl.pallas_call(
        kernel,
        out_shape=jax.ShapeDtypeStruct((nb, 1, 1), jnp.float32),
        grid=(nb,),
        in_specs=[
            pl.BlockSpec((2 * ATOMS, 2 * ATOMS), lambda i: (0, 0)),  # P2, resident
            pl.BlockSpec((tbp, 2 * ATOMS), lambda i: (i, 0)),        # packed anchor
            pl.BlockSpec((tbp, 2 * ATOMS), lambda i: (i, 0)),        # packed feature
        ],
        out_specs=pl.BlockSpec((1, 1, 1), lambda i: (i, 0, 0)),
        compiler_params=pltpu.CompilerParams(
            dimension_semantics=("parallel",),
            vmem_limit_bytes=vmem_limit),
    )(P2, anchor_p, feature_p)

    # 'batchmean': divide by the true (un-padded, un-packed) batch size.
    return jnp.sum(partials) / B


def kl_loss_ref(anchor, feature, skewness=0.0):
    """Pure-JAX reference mirroring the PyTorch forward exactly."""
    B, A = feature.shape
    supports = jnp.linspace(V_MIN, V_MAX, ATOMS)
    Tz = jnp.clip(skewness + supports, V_MIN, V_MAX)
    b = (Tz - V_MIN) / DELTA
    l = jnp.floor(b)
    u = jnp.ceil(b)
    eq = l == u
    l = jnp.where((u > 0) & eq, l - 1.0, l)
    u = jnp.where((l < ATOMS - 1) & (l == u), u + 1.0, u)
    li = l.astype(jnp.int32)
    ui = u.astype(jnp.int32)
    anchor = anchor.astype(jnp.float32)
    feature = feature.astype(jnp.float32)
    skewed = jnp.zeros((B, A), jnp.float32)
    skewed = skewed.at[:, li].add(anchor * (u - b)[None, :])
    skewed = skewed.at[:, ui].add(anchor * (b - l)[None, :])
    log_feat = jnp.log(feature + 1e-16)
    pointwise = jax.scipy.special.xlogy(skewed, skewed) - skewed * log_feat
    return jnp.sum(pointwise) / B


if __name__ == "__main__":
    key = jax.random.PRNGKey(0)
    k1, k2, k3, k4, k5, k6 = jax.random.split(key, 6)
    skewness = 0.37

    # Small case matching the module's usage (per-row categorical distributions).
    B = 2
    anchor = jax.nn.softmax(jax.random.normal(k1, (B, ATOMS), jnp.float32), axis=-1)
    feature = jax.nn.softmax(jax.random.normal(k2, (B, ATOMS), jnp.float32), axis=-1)
    loss = kl_loss(anchor, feature, skewness)
    jax.block_until_ready(loss)
    ref = kl_loss_ref(anchor, feature, skewness)
    assert jnp.allclose(loss, ref, rtol=1e-5, atol=1e-6), (loss, ref)

    # Multi-block case: exercises the batch grid, the pl.when-gated tail mask on
    # the last block, and the per-block partial reduction (25 packed rows,
    # 8-row packed tiles -> 4 grid blocks).
    B2 = 50
    anchor2 = jax.nn.softmax(jax.random.normal(k3, (B2, ATOMS), jnp.float32), axis=-1)
    feature2 = jax.nn.softmax(jax.random.normal(k4, (B2, ATOMS), jnp.float32), axis=-1)
    loss2 = kl_loss(anchor2, feature2, skewness, block_rows=16)
    jax.block_until_ready(loss2)
    ref2 = kl_loss_ref(anchor2, feature2, skewness)
    assert jnp.allclose(loss2, ref2, rtol=1e-5, atol=1e-6), (loss2, ref2)

    # Odd-batch case: exercises the zero-row pad of the 2-row lane fold.
    B3 = 7
    anchor3 = jax.nn.softmax(jax.random.normal(k5, (B3, ATOMS), jnp.float32), axis=-1)
    feature3 = jax.nn.softmax(jax.random.normal(k6, (B3, ATOMS), jnp.float32), axis=-1)
    loss3 = kl_loss(anchor3, feature3, skewness)
    jax.block_until_ready(loss3)
    ref3 = kl_loss_ref(anchor3, feature3, skewness)
    assert jnp.allclose(loss3, ref3, rtol=1e-5, atol=1e-6), (loss3, ref3)

    # bf16 inputs: MXU runs in bf16 (bf16 P2), logs/accumulation stay f32.
    # Looser tolerance: bf16 storage of inputs + bf16 P weights (~1e-3 rel).
    loss_bf16 = kl_loss(anchor2.astype(jnp.bfloat16),
                        feature2.astype(jnp.bfloat16), skewness)
    jax.block_until_ready(loss_bf16)
    ref_bf16 = kl_loss_ref(anchor2.astype(jnp.bfloat16).astype(jnp.float32),
                           feature2.astype(jnp.bfloat16).astype(jnp.float32),
                           skewness)
    assert jnp.allclose(loss_bf16, ref_bf16, rtol=2e-2, atol=1e-3), (loss_bf16, ref_bf16)

    print("KERNEL_OK")
</pallas_src>

<mosaic_0001>
module attributes {stable_mosaic.version = 11 : i64} {
  func.func @_kl_loss_kernel(%arg0: i32, %arg1: memref<102x102xf32, #tpu.memory_space<vmem>>, %arg2: memref<8x102xf32, #tpu.memory_space<vmem>>, %arg3: memref<8x102xf32, #tpu.memory_space<vmem>>, %arg4: memref<1x1x1xf32, #tpu.memory_space<vmem>>) attributes {dimension_semantics = [#tpu.dimension_semantics<parallel>], iteration_bounds = array<i64: 1>, scalar_prefetch = 0 : i64, scratch_operands = 0 : i64, tpu.core_type = #tpu.core_type<tc>, window_params = [{pipeline_mode = #tpu.pipeline_mode<synchronous>, transform_indices = @transform_0, window_bounds = array<i64: 102, 102>}, {transform_indices = @transform_1, window_bounds = array<i64: 8, 102>}, {transform_indices = @transform_2, window_bounds = array<i64: 8, 102>}, {transform_indices = @transform_3, window_bounds = array<i64: 1, 1, 1>}]} {
    %c0 = arith.constant 0 : index
    %c0_0 = arith.constant 0 : index
    %0 = vector.load %arg2[%c0, %c0_0] : memref<8x102xf32, #tpu.memory_space<vmem>>, vector<8x102xf32>
    %c0_1 = arith.constant 0 : index
    %c0_2 = arith.constant 0 : index
    %1 = vector.load %arg1[%c0_1, %c0_2] : memref<102x102xf32, #tpu.memory_space<vmem>>, vector<102x102xf32>
    %cst = arith.constant dense<0.000000e+00> : vector<8x102xf32>
    %2 = tpu.matmul %0, %1, %cst {dimension_numbers = #tpu.dot_dimension_numbers<[1], [0], [0], [1], [0, 0, 1, 1], [], []>} : vector<8x102xf32>, vector<102x102xf32>, vector<8x102xf32> -> vector<8x102xf32>
    %c0_3 = arith.constant 0 : index
    %c0_4 = arith.constant 0 : index
    %3 = vector.load %arg3[%c0_3, %c0_4] : memref<8x102xf32, #tpu.memory_space<vmem>>, vector<8x102xf32>
    %cst_5 = arith.constant 1.000000e-16 : f32
    %4 = vector.broadcast %cst_5 : f32 to vector<8x102xf32>
    %5 = arith.addf %3, %4 : vector<8x102xf32>
    %6 = math.log %5 : vector<8x102xf32>
    %cst_6 = arith.constant 0.000000e+00 : f32
    %7 = vector.broadcast %cst_6 : f32 to vector<8x102xf32>
    %8 = arith.cmpf one, %2, %7 : vector<8x102xf32>
    %cst_7 = arith.constant 1.000000e+00 : f32
    %9 = vector.broadcast %cst_7 : f32 to vector<8x102xf32>
    %10 = arith.select %8, %2, %9 : vector<8x102xi1>, vector<8x102xf32>
    %11 = math.log %10 : vector<8x102xf32>
    %12 = arith.subf %11, %6 : vector<8x102xf32>
    %13 = arith.mulf %2, %12 : vector<8x102xf32>
    %c0_i32 = arith.constant 0 : i32
    %14 = arith.cmpi ne, %arg0, %c0_i32 : i32
    %15 = arith.extui %14 : i1 to i32
    %c0_i32_8 = arith.constant 0 : i32
    %16 = arith.cmpi ne, %15, %c0_i32_8 : i32
    scf.if %16 {
      %20 = vector.shape_cast %13 : vector<8x102xf32> to vector<1x8x102xf32>
      %cst_11 = arith.constant dense<0.000000e+00> : vector<1xf32>
      %21 = vector.multi_reduction <add>, %20, %cst_11 [1, 2] : vector<1x8x102xf32> to vector<1xf32>
      %22 = vector.shape_cast %21 : vector<1xf32> to vector<1x1x1xf32>
      %23 = vector.extract %22[0, 0, 0] : f32 from vector<1x1x1xf32>
      %24 = vector.broadcast %23 : f32 to vector<1x1xf32>
      %c0_12 = arith.constant 0 : index
      %c0_13 = arith.constant 0 : index
      %c0_14 = arith.constant 0 : index
      %25 = vector.load %arg4[%c0_12, %c0_13, %c0_14] : memref<1x1x1xf32, #tpu.memory_space<vmem>>, vector<1x1x1xf32>
      %26 = vector.shape_cast %25 : vector<1x1x1xf32> to vector<1x1xf32>
      %27 = vector.shape_cast %24 : vector<1x1xf32> to vector<1x1x1xf32>
      tpu.vector_store %arg4[%c0_12, %c0_13, %c0_14], %27 {strides = array<i32>} : memref<1x1x1xf32, #tpu.memory_space<vmem>>, vector<1x1x1xf32>,
    } else {
    }
    %c0_i32_9 = arith.constant 0 : i32
    %17 = arith.cmpi eq, %arg0, %c0_i32_9 : i32
    %18 = arith.extui %17 : i1 to i32
    %c0_i32_10 = arith.constant 0 : i32
    %19 = arith.cmpi ne, %18, %c0_i32_10 : i32
    scf.if %19 {
      %c8_i32 = arith.constant 8 : i32
      %20 = arith.muli %arg0, %c8_i32 : i32
      %c1_i32 = arith.constant 1 : i32
      %21 = arith.subi %c1_i32, %20 : i32
      %22 = tpu.iota {dimensions = array<i32: 0>} : vector<8x102xi32>
      %23 = vector.broadcast %21 : i32 to vector<8x102xi32>
      %24 = arith.cmpi slt, %22, %23 : vector<8x102xi32>
      %cst_11 = arith.constant 0.000000e+00 : f32
      %25 = vector.broadcast %cst_11 : f32 to vector<8x102xf32>
      %26 = arith.select %24, %13, %25 : vector<8x102xi1>, vector<8x102xf32>
      %27 = vector.shape_cast %26 : vector<8x102xf32> to vector<1x8x102xf32>
      %cst_12 = arith.constant dense<0.000000e+00> : vector<1xf32>
      %28 = vector.multi_reduction <add>, %27, %cst_12 [1, 2] : vector<1x8x102xf32> to vector<1xf32>
      %29 = vector.shape_cast %28 : vector<1xf32> to vector<1x1x1xf32>
      %30 = vector.extract %29[0, 0, 0] : f32 from vector<1x1x1xf32>
      %31 = vector.broadcast %30 : f32 to vector<1x1xf32>
      %c0_13 = arith.constant 0 : index
      %c0_14 = arith.constant 0 : index
      %c0_15 = arith.constant 0 : index
      %32 = vector.load %arg4[%c0_13, %c0_14, %c0_15] : memref<1x1x1xf32, #tpu.memory_space<vmem>>, vector<1x1x1xf32>
      %33 = vector.shape_cast %32 : vector<1x1x1xf32> to vector<1x1xf32>
      %34 = vector.shape_cast %31 : vector<1x1xf32> to vector<1x1x1xf32>
      tpu.vector_store %arg4[%c0_13, %c0_14, %c0_15], %34 {strides = array<i32>} : memref<1x1x1xf32, #tpu.memory_space<vmem>>, vector<1x1x1xf32>,
    } else {
    }
    return
  }
  func.func @transform_0(%arg0: i32) -> (i32, i32) {
    %c0_i32 = arith.constant 0 : i32
    %c0_i32_0 = arith.constant 0 : i32
    %c0_i32_1 = arith.constant 0 : i32
    return %c0_i32, %c0_i32_0 : i32, i32
  }
  func.func @transform_1(%arg0: i32) -> (i32, i32) {
    %c0_i32 = arith.constant 0 : i32
    %c0_i32_0 = arith.constant 0 : i32
    return %arg0, %c0_i32 : i32, i32
  }
  func.func @transform_2(%arg0: i32) -> (i32, i32) {
    %c0_i32 = arith.constant 0 : i32
    %c0_i32_0 = arith.constant 0 : i32
    return %arg0, %c0_i32 : i32, i32
  }
  func.func @transform_3(%arg0: i32) -> (i32, i32, i32) {
    %c0_i32 = arith.constant 0 : i32
    %c0_i32_0 = arith.constant 0 : i32
    %c0_i32_1 = arith.constant 0 : i32
    return %arg0, %c0_i32, %c0_i32_0 : i32, i32, i32
  }
}

</mosaic_0001>

<llo_original>
// kernel: tpu_custom_call.1
$region0: #{tpu_custom_call.1}
  #allocation0 [shape = 'u32[]', space=smem, size = 0x4, offset = 0x4, fixed_abs, tag = 'smem constant byte address 0x4 - core index']
  #allocation1 [shape = 'u32[144,128]{1,0:T(1,128)}', space=vmem, size = 0x12000, scoped, tag = 'internal scratch']
  %s0 = inlined_call_operand.hbm [shape: f32[102,102], index: 0, kind: input, shape index: {}]
  %s1 = inlined_call_operand.vmem [shape: f32[1,102], index: 1, kind: input, shape index: {}]
  %s2 = inlined_call_operand.vmem [shape: f32[1,102], index: 2, kind: input, shape index: {}]
  %s3 = inlined_call_operand.hbm [shape: f32[1,1,1], index: 3, kind: output, shape index: {}]
  %s4 = sld [smem:[#allocation0]]
  $region34: #{tpu_custom_call.1} parent=0
    _
  %s6 = ssub.s32 1, %s4
  %s7 = scalar_select 0, %s6, %s4
  $region1: #{tpu_custom_call.1} parent=0
    #allocation2 [shape = 'u8[53248]{0}', space=vmem, size = 0xd000, scoped, tag = 'input window, operand 0, single buffered']
    #allocation3 [shape = 's32[1]{0}', space=sflag, size = 0x4, scoped, tag = 'scoped memory for tpu_custom_call.1']
    #allocation4 [shape = 's32[1]{0}', space=sflag, size = 0x4, scoped, tag = 'scoped memory for tpu_custom_call.1']
    #allocation5 [shape = 'u8[512]{0}', space=vmem, size = 0x400, scoped, tag = 'output window, operand 0, single buffered']
    %8 = vsyncpa [#allocation3], 0
    %9 = vsyncpa [#allocation4], 0
    // Predicated region
    $region2: #{tpu_custom_call.1} parent=1 // pred_check
      _
    $region3: #{tpu_custom_call.1} parent=1 // pred_check_branch
      %11 = sbr.rel (0) target = $region5
    $region4: #{tpu_custom_call.1} parent=1 // pred_region
      %s13 = ssub.s32 1664, 1664
      %14 = vsyncadd [#allocation3], %s13
      %s15 = sshll.u32 [#allocation2], 4
      %s16 = int_to_ptr.vmem [resolvable:$true] %s15
      %21 = dma.hbm_to_vmem [thread:$0]  %s0, 1664, %s16, [#allocation3], 128, 128, 8
    $region5: #{tpu_custom_call.1} parent=1 // pred_fallthru
      _
    // Predicated region
    $region6: #{tpu_custom_call.1} parent=1 // pred_check
      _
    $region7: #{tpu_custom_call.1} parent=1 // pred_check_branch
      %23 = sbr.rel (0) target = $region9
    $region8: #{tpu_custom_call.1} parent=1 // pred_region
      _
    $region9: #{tpu_custom_call.1} parent=1 // pred_fallthru
      _
    // Predicated region
    $region10: #{tpu_custom_call.1} parent=1 // pred_check
      _
    $region11: #{tpu_custom_call.1} parent=1 // pred_check_branch
      %25 = sbr.rel (0) target = $region13
    $region12: #{tpu_custom_call.1} parent=1 // pred_region
      _
    $region13: #{tpu_custom_call.1} parent=1 // pred_fallthru
      _
    // Predicated region
    $region14: #{tpu_custom_call.1} parent=1 // pred_check
      _
    $region15: #{tpu_custom_call.1} parent=1 // pred_check_branch
      %27 = sbr.rel (0) target = $region17
    $region16: #{tpu_custom_call.1} parent=1 // pred_region
      %28 = dma.done [#allocation3], 1664
    $region17: #{tpu_custom_call.1} parent=1 // pred_fallthru
      _
    %v29 = vld [vmem:[%s1] sm:$0xff]
    %v30 = vld [vmem:[#allocation2] sm:$0xff]
    %v31 = vld [vmem:[#allocation2 + $0x8] sm:$0xff]
    %v32 = vld [vmem:[#allocation2 + $0x10] sm:$0xff]
    %v33 = vld [vmem:[#allocation2 + $0x18] sm:$0xff]
    %v34 = vld [vmem:[#allocation2 + $0x20] sm:$0xff]
    %v35 = vld [vmem:[#allocation2 + $0x28] sm:$0xff]
    %v36 = vld [vmem:[#allocation2 + $0x30] sm:$0xff]
    %v37 = vld [vmem:[#allocation2 + $0x38] sm:$0xff]
    %v38 = vld [vmem:[#allocation2 + $0x40] sm:$0xff]
    %v39 = vld [vmem:[#allocation2 + $0x48] sm:$0xff]
    %v40 = vld [vmem:[#allocation2 + $0x50] sm:$0xff]
    %v41 = vld [vmem:[#allocation2 + $0x58] sm:$0xff]
    %v42 = vld [vmem:[#allocation2 + $0x60] sm:$0x3f]
    %vm43 = vcmask 834560
    %v45 = vsel %vm43, %v29, 0
    %vm47 = vcmask 1045504
    %v49 = vsel %vm47, %v42, 0
    %51 = vmatprep.subr.mxu0 0.0
    %52 = vmatpush1.msra.mxu0 0.0
    %53 = vmatprep.subr.mxu0 0.0
    %54 = vmatpush1.msra.mxu0 0.0
    %55 = vmatprep.subr.mxu0 0.0
    %56 = vmatpush1.msra.mxu0 0.0
    %57 = vmatprep.subr.mxu0 0.0
    %58 = vmatpush1.msra.mxu0 %v49
    %59 = vmatprep.subr.mxu0 0.0
    %60 = vmatpush1.msra.mxu0 %v41
    %61 = vmatprep.subr.mxu0 0.0
    %62 = vmatpush1.msra.mxu0 %v40
    %63 = vmatprep.subr.mxu0 0.0
    %64 = vmatpush1.msra.mxu0 %v39
    %65 = vmatprep.subr.mxu0 0.0
    %66 = vmatpush1.msra.mxu0 %v38
    %67 = vmatprep.subr.mxu0 0.0
    %68 = vmatpush1.msra.mxu0 %v37
    %69 = vmatprep.subr.mxu0 0.0
    %70 = vmatpush1.msra.mxu0 %v36
    %71 = vmatprep.subr.mxu0 0.0
    %72 = vmatpush1.msra.mxu0 %v35
    %73 = vmatprep.subr.mxu0 0.0
    %74 = vmatpush1.msra.mxu0 %v34
    %75 = vmatprep.subr.mxu0 0.0
    %76 = vmatpush1.msra.mxu0 %v33
    %77 = vmatprep.subr.mxu0 0.0
    %78 = vmatpush1.msra.mxu0 %v32
    %79 = vmatprep.subr.mxu0 0.0
    %80 = vmatpush1.msra.mxu0 %v31
    %81 = vmatprep.subr.mxu0 0.0
    %82 = vmatpush1.msra.mxu0 %v30
    %83 = vmatprep.subr.mxu0 0.0
    %84 = vmatpush2.msra.mxu0 0.0
    %85 = vmatprep.subr.mxu0 0.0
    %86 = vmatpush2.msra.mxu0 0.0
    %87 = vmatprep.subr.mxu0 0.0
    %88 = vmatpush2.msra.mxu0 0.0
    %89 = vmatprep.subr.mxu0 0.0
    %90 = vmatpush2.msra.mxu0 0.0
    %91 = vmatprep.subr.mxu0 0.0
    %92 = vmatpush2.msra.mxu0 0.0
    %93 = vmatprep.subr.mxu0 0.0
    %94 = vmatpush2.msra.mxu0 0.0
    %95 = vmatprep.subr.mxu0 0.0
    %96 = vmatpush2.msra.mxu0 0.0
    %97 = vmatprep.subr.mxu0 0.0
    %98 = vmatpush2.msra.mxu0 0.0
    %99 = vmatprep.subr.mxu0 0.0
    %100 = vmatpush2.msra.mxu0 0.0
    %101 = vmatprep.subr.mxu0 0.0
    %102 = vmatpush2.msra.mxu0 0.0
    %103 = vmatprep.subr.mxu0 0.0
    %104 = vmatpush2.msra.mxu0 0.0
    %105 = vmatprep.subr.mxu0 0.0
    %106 = vmatpush2.msra.mxu0 0.0
    %107 = vmatprep.subr.mxu0 0.0
    %108 = vmatpush2.msra.mxu0 0.0
    %109 = vmatprep.subr.mxu0 0.0
    %110 = vmatpush2.msra.mxu0 0.0
    %111 = vmatprep.subr.mxu0 0.0
    %112 = vmatpush2.msra.mxu0 0.0
    %113 = vmatprep.subr.mxu0 0.0
    %114 = vmatpush2.msra.mxu0 0.0
    %115 = vmatprep.mubr.f32.mxu0 0.0
    %116 = vmatmul.mubr.f32.gmra.mxu0 %v45
    %v117 = vpop.f32.mrf.mxu0
    %v118 = vadd.f32 0.0, %v117
    %v119 = vpop.f32.mrf.mxu0
    %120 = vdwg.mxu0
    %v121 = vld [vmem:[%s2] sm:$0xff]
    %v122 = vadd.f32 %v121, 1e-16
    %v123 = vlog2.pop %v122
    %v124 = vmul.f32 %v123, 0.6931472
    %vm125 = vcmp.ne.f32.partialorder %v118, 0.0
    %v126 = vsel %vm125, %v118, 1.0
    %v127 = vlog2.pop %v126
    %v128 = vmul.f32 %v127, 0.6931472
    %v129 = vsub.f32 %v128, %v124
    %v130 = vmul.f32 %v118, %v129
    %p131 = scmp.ne.s32.totalorder 0, 0
    // Predicated region
    $region18: #{tpu_custom_call.1} parent=1 // pred_check
      %p132 = pneg %p131
    $region19: #{tpu_custom_call.1} parent=1 // pred_check_branch
      %134 = sbr.rel (%p132) target = $region21
    $region20: #{tpu_custom_call.1} parent=1 // pred_region
      %v135 = vsel %vm43, %v130, 0.0
      %136 = vadd.xlane.f32.xlu0 %v135
      %v137 = vpop.xlane.xlu0 %136
      %v138 = vrot.slane %v137, 4
      %v139 = vadd.f32 %v137, %v138
      %v140 = vrot.slane %v139, 2
      %v141 = vadd.f32 %v139, %v140
      %v142 = vrot.slane %v141, 1
      %v143 = vadd.f32 %v141, %v142
      %s144 = vtos %v143
      %v145 = vstv %s144
      %vm146 = vcmask 0
      %147 = vst.msk [vmem:[#allocation5] sm:$0x1] %vm146, %v145
    $region21: #{tpu_custom_call.1} parent=1 // pred_fallthru
      _
    %p148 = scmp.eq.s32.totalorder 0, 0
    // Predicated region
    $region22: #{tpu_custom_call.1} parent=1 // pred_check
      %p149 = pneg %p148
    $region23: #{tpu_custom_call.1} parent=1 // pred_check_branch
      %151 = sbr.rel (%p149) target = $region25
    $region24: #{tpu_custom_call.1} parent=1 // pred_region
      %s152 = smul.u32 0, 8
      %s153 = ssub.s32 1, %s152
      %v154 = vlaneseq
      %v155 = vshrl.u32 %v154, 7
      %v156 = vstv %s153
      %vm157 = vcmp.lt.s32.totalorder %v155, %v156
      %v158 = vsel %vm157, %v130, 0.0
      %v159 = vsel %vm43, %v158, 0.0
      %160 = vadd.xlane.f32.xlu0 %v159
      %v161 = vpop.xlane.xlu0 %160
      %v162 = vrot.slane %v161, 4
      %v163 = vadd.f32 %v161, %v162
      %v164 = vrot.slane %v163, 2
      %v165 = vadd.f32 %v163, %v164
      %v166 = vrot.slane %v165, 1
      %v167 = vadd.f32 %v165, %v166
      %s168 = vtos %v167
      %v169 = vstv %s168
      %vm170 = vcmask 0
      %171 = vst.msk [vmem:[#allocation5] sm:$0x1] %vm170, %v169
    $region25: #{tpu_custom_call.1} parent=1 // pred_fallthru
      _
    // Predicated region
    $region26: #{tpu_custom_call.1} parent=1 // pred_check
      _
    $region27: #{tpu_custom_call.1} parent=1 // pred_check_branch
      %173 = sbr.rel (0) target = $region29
    $region28: #{tpu_custom_call.1} parent=1 // pred_region
      %s175 = ssub.s32 16, 16
      %176 = vsyncadd [#allocation4], %s175
      %s178 = sshll.u32 [#allocation5], 4
      %s179 = int_to_ptr.vmem [resolvable:$true] %s178
      %181 = dma.vmem_to_hbm [thread:$0]  %s179, 16, %s3, [#allocation4]
    $region29: #{tpu_custom_call.1} parent=1 // pred_fallthru
      _
    // Predicated region
    $region30: #{tpu_custom_call.1} parent=1 // pred_check
      _
    $region31: #{tpu_custom_call.1} parent=1 // pred_check_branch
      %183 = sbr.rel (0) target = $region33
    $region32: #{tpu_custom_call.1} parent=1 // pred_region
      %184 = dma.done [#allocation4], 16
    $region33: #{tpu_custom_call.1} parent=1 // pred_fallthru
      _
    %185 = vsyncpa [#allocation3], 1
    %186 = vsyncpa [#allocation4], 1

</llo_original>
